<compile_context>
chip_gen: v6e
topology: v6e:2x2x1
jax: 0.10.0
libtpu: 0.0.40
codegen_flags: <defaults>
</compile_context>

<pallas_src>
import functools

import jax
import jax.numpy as jnp
from jax.experimental import pallas as pl
from jax.experimental.pallas import tpu as pltpu


def cdan_loss_kernel(g_ref, f_ref, w1t_ref, b1_ref, w2_ref, b2_ref,
                     loss_ref, acc_num_ref, acc_den_ref, *,
                     num_classes, hidden_dim, tile_rows, total_valid,
                     source_size, entropy_conditioning, mxu_dtype):
    i = pl.program_id(0)
    C, H, TN = num_classes, hidden_dim, tile_rows

    @pl.when(i == 0)
    def _init():
        acc_num_ref[...] = jnp.zeros_like(acc_num_ref)
        acc_den_ref[...] = jnp.zeros_like(acc_den_ref)

    g = g_ref[...].astype(jnp.float32)                     # (TN, C) logits
    f = f_ref[...].astype(jnp.float32)                     # (TN, D) features

    # --- softmax over classes (forward of .detach() is identity) -----------
    g_max = jnp.max(g, axis=1, keepdims=True)
    e = jnp.exp(g - g_max)
    s = jnp.sum(e, axis=1, keepdims=True)
    r = pl.reciprocal(s, approx=True)                      # EUP slot
    r = r * (2.0 - s * r)                                  # 1 Newton step -> ~exact
    p = e * r                                              # (TN, C)

    # --- multilinear map fused into the first Linear ------------------------
    #   z1[n,h] = sum_{c,d} p[n,c] f[n,d] W1[c*D+d, h] + b1[h]
    #           = sum_c p[n,c] * (f @ W1')[n, c*H+h] + b1[h]
    # One lane-dense MXU matmul; no (N, C*D) scratch, no masked partial stores.
    # (mxu_dtype=bf16 is recommended on v6e/v7x for large D; f32 here keeps the
    #  tiny demo bit-comparable to the reference.)
    t = jnp.dot(f.astype(mxu_dtype), w1t_ref[...].astype(mxu_dtype),
                preferred_element_type=jnp.float32)        # (TN, C*H)
    z1 = b1_ref[...] + p[:, 0:1] * t[:, 0:H]
    for c in range(1, C):          # static unroll; lane-slice loads only
        z1 = z1 + p[:, c:c + 1] * t[:, c * H:(c + 1) * H]
    a1 = jnp.maximum(z1, 0.0)                              # (TN, H)

    # --- second Linear (H -> 1) as VPU multiply + row reduce ----------------
    # (an (TN,H)x(H,1) matmul would have a 1-lane MXU output tile)
    z2 = jnp.sum(a1 * w2_ref[...], axis=1, keepdims=True) + b2_ref[...]  # (TN,1)

    # --- BCE from logits: log sigmoid(z) = min(z,0) - log(1+exp(-|z|)) ------
    sp = jnp.log(1.0 + jnp.exp(-jnp.abs(z2)))
    log_d = jnp.maximum(jnp.minimum(z2, 0.0) - sp, -100.0)
    log_1md = jnp.maximum(jnp.minimum(-z2, 0.0) - sp, -100.0)

    # --- labels / valid mask from global row index (no (N,1) DMA) -----------
    row = i * TN + jax.lax.broadcasted_iota(jnp.int32, (TN, 1), 0)
    y = (row < source_size).astype(jnp.float32)            # 1 = source domain
    valid = (row < total_valid).astype(jnp.float32)        # 0 for padded rows

    bce = -(y * log_d + (1.0 - y) * log_1md)               # (TN, 1)

    if entropy_conditioning:
        ent = -jnp.sum(p * jnp.log(p + 1e-5), axis=1, keepdims=True)
        w = 1.0 + jnp.exp(-ent)
        acc_num_ref[...] += jnp.sum(w * bce * valid, axis=0, keepdims=True)
        acc_den_ref[...] += jnp.sum(w * valid, axis=0, keepdims=True)
    else:
        acc_num_ref[...] += jnp.sum(bce * valid, axis=0, keepdims=True)

    @pl.when(i == pl.num_programs(0) - 1)
    def _finalize():
        if entropy_conditioning:
            # mean(w/sum(w)*N * bce) == sum(w*bce)/sum(w)
            loss_ref[...] = acc_num_ref[...] / acc_den_ref[...]
        else:
            loss_ref[...] = acc_num_ref[...] * (1.0 / float(total_valid))


def cdan_forward(g_s, f_s, g_t, f_t, params, entropy_conditioning=False,
                 tile_rows=128, mxu_dtype=jnp.float32):
    g = jnp.concatenate([g_s, g_t], axis=0).astype(jnp.float32)
    f = jnp.concatenate([f_s, f_t], axis=0).astype(jnp.float32)
    n_total, num_classes = g.shape
    features_dim = f.shape[1]
    hidden = params["w1"].shape[1]
    n_source = g_s.shape[0]

    # Batch tiling (pad batch to a multiple of the tile; rows are masked
    # in-kernel).  tile_rows should be sized so (tile*(C+D+1) + D*C*H)*4 bytes
    # (double-buffered tiles + resident weights) stays well inside the scoped
    # VMEM budget (v7x: 64 MiB physical / 32 MiB scoped default).
    tn = tile_rows
    n_pad = pl.cdiv(n_total, tn) * tn
    if n_pad != n_total:
        g = jnp.pad(g, ((0, n_pad - n_total), (0, 0)))
        f = jnp.pad(f, ((0, n_pad - n_total), (0, 0)))

    # Pre-transpose W1: (C*D, H) -> (C, D, H) -> (D, C, H) -> (D, C*H).
    w1t = (params["w1"].astype(jnp.float32)
           .reshape(num_classes, features_dim, hidden)
           .transpose(1, 0, 2)
           .reshape(features_dim, num_classes * hidden))
    b1 = params["b1"].reshape(1, hidden).astype(jnp.float32)
    w2_row = params["w2"].reshape(1, hidden).astype(jnp.float32)
    b2 = params["b2"].reshape(1, 1).astype(jnp.float32)

    kernel = functools.partial(
        cdan_loss_kernel,
        num_classes=num_classes, hidden_dim=hidden, tile_rows=tn,
        total_valid=n_total, source_size=n_source,
        entropy_conditioning=entropy_conditioning, mxu_dtype=mxu_dtype)

    loss = pl.pallas_call(
        kernel,
        out_shape=jax.ShapeDtypeStruct((1, 1), jnp.float32),
        grid_spec=pltpu.PrefetchScalarGridSpec(
            num_scalar_prefetch=0,
            grid=(n_pad // tn,),
            in_specs=[
                pl.BlockSpec((tn, num_classes), lambda i: (i, 0)),          # g tile
                pl.BlockSpec((tn, features_dim), lambda i: (i, 0)),         # f tile
                pl.BlockSpec((features_dim, num_classes * hidden),
                             lambda i: (0, 0)),                              # W1' resident
                pl.BlockSpec((1, hidden), lambda i: (0, 0)),                 # b1 resident
                pl.BlockSpec((1, hidden), lambda i: (0, 0)),                 # w2 row resident
                pl.BlockSpec((1, 1), lambda i: (0, 0)),                      # b2 resident
            ],
            out_specs=pl.BlockSpec((1, 1), lambda i: (0, 0)),                # scalar loss
            scratch_shapes=[pltpu.VMEM((1, 1), jnp.float32),                 # sum(w*bce)
                            pltpu.VMEM((1, 1), jnp.float32)],                # sum(w)
        ),
        compiler_params=pltpu.CompilerParams(
            dimension_semantics=("arbitrary",)),  # batch axis is a reduction
    )(g, f, w1t, b1, w2_row, b2)
    return loss[0, 0]


def cdan_reference(g_s, f_s, g_t, f_t, params):
    """Pure-JAX reference of the same forward (entropy_conditioning=False)."""
    g = jnp.concatenate([g_s, g_t], axis=0)
    f = jnp.concatenate([f_s, f_t], axis=0)
    p = jax.nn.softmax(g, axis=1)
    n = g.shape[0]
    h = (p[:, :, None] * f[:, None, :]).reshape(n, -1)
    z1 = jnp.maximum(h @ params["w1"] + params["b1"], 0.0)
    d = jax.nn.sigmoid(z1 @ params["w2"] + params["b2"])
    y = jnp.concatenate(
        [jnp.ones((g_s.shape[0], 1)), jnp.zeros((g_t.shape[0], 1))], axis=0)
    log_d = jnp.maximum(jnp.log(d), -100.0)
    log_1md = jnp.maximum(jnp.log(1.0 - d), -100.0)
    return jnp.mean(-(y * log_d + (1.0 - y) * log_1md))


if __name__ == "__main__":
    # Small, module-consistent shapes: per-domain batch 10, 8 classes,
    # 16 features, hidden 32 (discriminator input dim = C*D = 128, C*H = 256).
    # tile_rows=8 gives a 3-step grid (exercises accumulation, the mid-tile
    # source/target label boundary, and padded-row masking: N=20 -> N_pad=24).
    B, C, D, H = 10, 8, 16, 32

    key = jax.random.PRNGKey(0)
    k1, k2, k3, k4, k5, k6 = jax.random.split(key, 6)

    g_s = jax.random.normal(k1, (B, C), jnp.float32)
    f_s = jax.random.normal(k2, (B, D), jnp.float32)
    g_t = jax.random.normal(k3, (B, C), jnp.float32)
    f_t = jax.random.normal(k4, (B, D), jnp.float32)

    # Deterministic discriminator params (synthetic; no checkpoint load).
    params = {
        "w1": jax.random.normal(k5, (C * D, H), jnp.float32) * 0.05,
        "b1": jnp.zeros((1, H), jnp.float32),
        "w2": jax.random.normal(k6, (H, 1), jnp.float32) * 0.05,
        "b2": jnp.zeros((1, 1), jnp.float32),
    }

    loss = cdan_forward(g_s, f_s, g_t, f_t, params, tile_rows=8)
    jax.block_until_ready(loss)

    ref = cdan_reference(g_s, f_s, g_t, f_t, params)
    # Tolerance covers the approx-reciprocal (+Newton) softmax and the
    # logits-form BCE; both are ~1e-6 off the exact f32 reference.
    assert jnp.allclose(loss, ref, rtol=5e-4, atol=5e-4), (loss, ref)

    print("KERNEL_OK")
</pallas_src>

<mosaic_0001>
module attributes {stable_mosaic.version = 11 : i64} {
  func.func @cdan_loss_kernel(%arg0: i32, %arg1: memref<8x8xf32, #tpu.memory_space<vmem>>, %arg2: memref<8x16xf32, #tpu.memory_space<vmem>>, %arg3: memref<16x256xf32, #tpu.memory_space<vmem>>, %arg4: memref<1x32xf32, #tpu.memory_space<vmem>>, %arg5: memref<1x32xf32, #tpu.memory_space<vmem>>, %arg6: memref<1x1xf32, #tpu.memory_space<vmem>>, %arg7: memref<1x1xf32, #tpu.memory_space<vmem>>, %arg8: memref<1x1xf32, #tpu.memory_space<vmem>>, %arg9: memref<1x1xf32, #tpu.memory_space<vmem>>) attributes {dimension_semantics = [#tpu.dimension_semantics<arbitrary>], iteration_bounds = array<i64: 3>, scalar_prefetch = 0 : i64, scratch_operands = 2 : i64, tpu.core_type = #tpu.core_type<tc>, window_params = [{transform_indices = @transform_0, window_bounds = array<i64: 8, 8>}, {transform_indices = @transform_1, window_bounds = array<i64: 8, 16>}, {pipeline_mode = #tpu.pipeline_mode<synchronous>, transform_indices = @transform_2, window_bounds = array<i64: 16, 256>}, {pipeline_mode = #tpu.pipeline_mode<synchronous>, transform_indices = @transform_3, window_bounds = array<i64: 1, 32>}, {pipeline_mode = #tpu.pipeline_mode<synchronous>, transform_indices = @transform_4, window_bounds = array<i64: 1, 32>}, {pipeline_mode = #tpu.pipeline_mode<synchronous>, transform_indices = @transform_5, window_bounds = array<i64: 1, 1>}, {pipeline_mode = #tpu.pipeline_mode<synchronous>, transform_indices = @transform_6, window_bounds = array<i64: 1, 1>}]} {
    %c0_i32 = arith.constant 0 : i32
    %0 = arith.cmpi eq, %arg0, %c0_i32 : i32
    %1 = arith.extui %0 : i1 to i32
    %c0_i32_0 = arith.constant 0 : i32
    %2 = arith.cmpi ne, %1, %c0_i32_0 : i32
    scf.if %2 {
      %cst_32 = arith.constant 0.000000e+00 : f32
      %120 = vector.broadcast %cst_32 : f32 to vector<1x1xf32>
      %c0_33 = arith.constant 0 : index
      %c0_34 = arith.constant 0 : index
      %121 = vector.load %arg8[%c0_33, %c0_34] : memref<1x1xf32, #tpu.memory_space<vmem>>, vector<1x1xf32>
      tpu.vector_store %arg8[%c0_33, %c0_34], %120 {strides = array<i32>} : memref<1x1xf32, #tpu.memory_space<vmem>>, vector<1x1xf32>,
      %cst_35 = arith.constant 0.000000e+00 : f32
      %122 = vector.broadcast %cst_35 : f32 to vector<1x1xf32>
      %c0_36 = arith.constant 0 : index
      %c0_37 = arith.constant 0 : index
      %123 = vector.load %arg9[%c0_36, %c0_37] : memref<1x1xf32, #tpu.memory_space<vmem>>, vector<1x1xf32>
      tpu.vector_store %arg9[%c0_36, %c0_37], %122 {strides = array<i32>} : memref<1x1xf32, #tpu.memory_space<vmem>>, vector<1x1xf32>,
    } else {
    }
    %c0 = arith.constant 0 : index
    %c0_1 = arith.constant 0 : index
    %3 = vector.load %arg1[%c0, %c0_1] : memref<8x8xf32, #tpu.memory_space<vmem>>, vector<8x8xf32>
    %c0_2 = arith.constant 0 : index
    %c0_3 = arith.constant 0 : index
    %4 = vector.load %arg2[%c0_2, %c0_3] : memref<8x16xf32, #tpu.memory_space<vmem>>, vector<8x16xf32>
    %cst = arith.constant dense<0xFF800000> : vector<8xf32>
    %5 = vector.multi_reduction <maximumf>, %3, %cst [1] : vector<8x8xf32> to vector<8xf32>
    %6 = vector.shape_cast %5 : vector<8xf32> to vector<8x1xf32>
    %7 = vector.broadcast %6 : vector<8x1xf32> to vector<8x8xf32>
    %8 = arith.subf %3, %7 : vector<8x8xf32>
    %9 = math.exp %8 : vector<8x8xf32>
    %cst_4 = arith.constant dense<0.000000e+00> : vector<8xf32>
    %10 = vector.multi_reduction <add>, %9, %cst_4 [1] : vector<8x8xf32> to vector<8xf32>
    %11 = vector.shape_cast %10 : vector<8xf32> to vector<8x1xf32>
    %12 = tpu.reciprocal %11 {approx = true} : vector<8x1xf32> -> vector<8x1xf32>
    %13 = arith.mulf %11, %12 : vector<8x1xf32>
    %cst_5 = arith.constant 2.000000e+00 : f32
    %14 = vector.broadcast %cst_5 : f32 to vector<8x1xf32>
    %15 = arith.subf %14, %13 : vector<8x1xf32>
    %16 = arith.mulf %12, %15 : vector<8x1xf32>
    %17 = vector.broadcast %16 : vector<8x1xf32> to vector<8x8xf32>
    %18 = arith.mulf %9, %17 : vector<8x8xf32>
    %c0_6 = arith.constant 0 : index
    %c0_7 = arith.constant 0 : index
    %19 = vector.load %arg3[%c0_6, %c0_7] : memref<16x256xf32, #tpu.memory_space<vmem>>, vector<16x256xf32>
    %cst_8 = arith.constant dense<0.000000e+00> : vector<8x256xf32>
    %20 = tpu.matmul %4, %19, %cst_8 {dimension_numbers = #tpu.dot_dimension_numbers<[1], [0], [0], [1], [0, 0, 1, 1], [], []>} : vector<8x16xf32>, vector<16x256xf32>, vector<8x256xf32> -> vector<8x256xf32>
    %c0_9 = arith.constant 0 : index
    %c0_10 = arith.constant 0 : index
    %21 = vector.load %arg4[%c0_9, %c0_10] : memref<1x32xf32, #tpu.memory_space<vmem>>, vector<1x32xf32>
    %22 = vector.extract_strided_slice %18 {offsets = [0, 0], sizes = [8, 1], strides = [1, 1]} : vector<8x8xf32> to vector<8x1xf32>
    %23 = vector.extract_strided_slice %20 {offsets = [0, 0], sizes = [8, 32], strides = [1, 1]} : vector<8x256xf32> to vector<8x32xf32>
    %24 = vector.broadcast %22 : vector<8x1xf32> to vector<8x32xf32>
    %25 = arith.mulf %24, %23 : vector<8x32xf32>
    %26 = vector.broadcast %21 : vector<1x32xf32> to vector<8x32xf32>
    %27 = arith.addf %26, %25 : vector<8x32xf32>
    %28 = vector.extract_strided_slice %18 {offsets = [0, 1], sizes = [8, 1], strides = [1, 1]} : vector<8x8xf32> to vector<8x1xf32>
    %29 = vector.extract_strided_slice %20 {offsets = [0, 32], sizes = [8, 32], strides = [1, 1]} : vector<8x256xf32> to vector<8x32xf32>
    %30 = vector.broadcast %28 : vector<8x1xf32> to vector<8x32xf32>
    %31 = arith.mulf %30, %29 : vector<8x32xf32>
    %32 = arith.addf %27, %31 : vector<8x32xf32>
    %33 = vector.extract_strided_slice %18 {offsets = [0, 2], sizes = [8, 1], strides = [1, 1]} : vector<8x8xf32> to vector<8x1xf32>
    %34 = vector.extract_strided_slice %20 {offsets = [0, 64], sizes = [8, 32], strides = [1, 1]} : vector<8x256xf32> to vector<8x32xf32>
    %35 = vector.broadcast %33 : vector<8x1xf32> to vector<8x32xf32>
    %36 = arith.mulf %35, %34 : vector<8x32xf32>
    %37 = arith.addf %32, %36 : vector<8x32xf32>
    %38 = vector.extract_strided_slice %18 {offsets = [0, 3], sizes = [8, 1], strides = [1, 1]} : vector<8x8xf32> to vector<8x1xf32>
    %39 = vector.extract_strided_slice %20 {offsets = [0, 96], sizes = [8, 32], strides = [1, 1]} : vector<8x256xf32> to vector<8x32xf32>
    %40 = vector.broadcast %38 : vector<8x1xf32> to vector<8x32xf32>
    %41 = arith.mulf %40, %39 : vector<8x32xf32>
    %42 = arith.addf %37, %41 : vector<8x32xf32>
    %43 = vector.extract_strided_slice %18 {offsets = [0, 4], sizes = [8, 1], strides = [1, 1]} : vector<8x8xf32> to vector<8x1xf32>
    %44 = vector.extract_strided_slice %20 {offsets = [0, 128], sizes = [8, 32], strides = [1, 1]} : vector<8x256xf32> to vector<8x32xf32>
    %45 = vector.broadcast %43 : vector<8x1xf32> to vector<8x32xf32>
    %46 = arith.mulf %45, %44 : vector<8x32xf32>
    %47 = arith.addf %42, %46 : vector<8x32xf32>
    %48 = vector.extract_strided_slice %18 {offsets = [0, 5], sizes = [8, 1], strides = [1, 1]} : vector<8x8xf32> to vector<8x1xf32>
    %49 = vector.extract_strided_slice %20 {offsets = [0, 160], sizes = [8, 32], strides = [1, 1]} : vector<8x256xf32> to vector<8x32xf32>
    %50 = vector.broadcast %48 : vector<8x1xf32> to vector<8x32xf32>
    %51 = arith.mulf %50, %49 : vector<8x32xf32>
    %52 = arith.addf %47, %51 : vector<8x32xf32>
    %53 = vector.extract_strided_slice %18 {offsets = [0, 6], sizes = [8, 1], strides = [1, 1]} : vector<8x8xf32> to vector<8x1xf32>
    %54 = vector.extract_strided_slice %20 {offsets = [0, 192], sizes = [8, 32], strides = [1, 1]} : vector<8x256xf32> to vector<8x32xf32>
    %55 = vector.broadcast %53 : vector<8x1xf32> to vector<8x32xf32>
    %56 = arith.mulf %55, %54 : vector<8x32xf32>
    %57 = arith.addf %52, %56 : vector<8x32xf32>
    %58 = vector.extract_strided_slice %18 {offsets = [0, 7], sizes = [8, 1], strides = [1, 1]} : vector<8x8xf32> to vector<8x1xf32>
    %59 = vector.extract_strided_slice %20 {offsets = [0, 224], sizes = [8, 32], strides = [1, 1]} : vector<8x256xf32> to vector<8x32xf32>
    %60 = vector.broadcast %58 : vector<8x1xf32> to vector<8x32xf32>
    %61 = arith.mulf %60, %59 : vector<8x32xf32>
    %62 = arith.addf %57, %61 : vector<8x32xf32>
    %cst_11 = arith.constant 0.000000e+00 : f32
    %63 = vector.broadcast %cst_11 : f32 to vector<8x32xf32>
    %64 = arith.maximumf %62, %63 : vector<8x32xf32>
    %c0_12 = arith.constant 0 : index
    %c0_13 = arith.constant 0 : index
    %65 = vector.load %arg5[%c0_12, %c0_13] : memref<1x32xf32, #tpu.memory_space<vmem>>, vector<1x32xf32>
    %66 = vector.broadcast %65 : vector<1x32xf32> to vector<8x32xf32>
    %67 = arith.mulf %64, %66 : vector<8x32xf32>
    %cst_14 = arith.constant dense<0.000000e+00> : vector<8xf32>
    %68 = vector.multi_reduction <add>, %67, %cst_14 [1] : vector<8x32xf32> to vector<8xf32>
    %69 = vector.shape_cast %68 : vector<8xf32> to vector<8x1xf32>
    %c0_15 = arith.constant 0 : index
    %c0_16 = arith.constant 0 : index
    %70 = vector.load %arg6[%c0_15, %c0_16] : memref<1x1xf32, #tpu.memory_space<vmem>>, vector<1x1xf32>
    %71 = vector.broadcast %70 : vector<1x1xf32> to vector<8x1xf32>
    %72 = arith.addf %69, %71 : vector<8x1xf32>
    %73 = math.absf %72 : vector<8x1xf32>
    %cst_17 = arith.constant 0.000000e+00 : f32
    %74 = vector.broadcast %cst_17 : f32 to vector<8x1xf32>
    %75 = arith.subf %74, %73 : vector<8x1xf32>
    %76 = math.exp %75 : vector<8x1xf32>
    %cst_18 = arith.constant 1.000000e+00 : f32
    %77 = vector.broadcast %cst_18 : f32 to vector<8x1xf32>
    %78 = arith.addf %77, %76 : vector<8x1xf32>
    %79 = math.log %78 : vector<8x1xf32>
    %cst_19 = arith.constant 0.000000e+00 : f32
    %80 = vector.broadcast %cst_19 : f32 to vector<8x1xf32>
    %81 = arith.minimumf %72, %80 : vector<8x1xf32>
    %82 = arith.subf %81, %79 : vector<8x1xf32>
    %cst_20 = arith.constant -1.000000e+02 : f32
    %83 = vector.broadcast %cst_20 : f32 to vector<8x1xf32>
    %84 = arith.maximumf %82, %83 : vector<8x1xf32>
    %cst_21 = arith.constant 0.000000e+00 : f32
    %85 = vector.broadcast %cst_21 : f32 to vector<8x1xf32>
    %86 = arith.subf %85, %72 : vector<8x1xf32>
    %cst_22 = arith.constant 0.000000e+00 : f32
    %87 = vector.broadcast %cst_22 : f32 to vector<8x1xf32>
    %88 = arith.minimumf %86, %87 : vector<8x1xf32>
    %89 = arith.subf %88, %79 : vector<8x1xf32>
    %cst_23 = arith.constant -1.000000e+02 : f32
    %90 = vector.broadcast %cst_23 : f32 to vector<8x1xf32>
    %91 = arith.maximumf %89, %90 : vector<8x1xf32>
    %c8_i32 = arith.constant 8 : i32
    %92 = arith.muli %arg0, %c8_i32 : i32
    %93 = tpu.iota {dimensions = array<i32: 0>} : vector<8x1xi32>
    %94 = vector.broadcast %92 : i32 to vector<8x1xi32>
    %95 = arith.addi %94, %93 : vector<8x1xi32>
    %c10_i32 = arith.constant 10 : i32
    %96 = vector.broadcast %c10_i32 : i32 to vector<8x1xi32>
    %97 = arith.cmpi slt, %95, %96 : vector<8x1xi32>
    %98 = arith.extui %97 : vector<8x1xi1> to vector<8x1xi32>
    %99 = arith.sitofp %98 : vector<8x1xi32> to vector<8x1xf32>
    %c20_i32 = arith.constant 20 : i32
    %100 = vector.broadcast %c20_i32 : i32 to vector<8x1xi32>
    %101 = arith.cmpi slt, %95, %100 : vector<8x1xi32>
    %102 = arith.extui %101 : vector<8x1xi1> to vector<8x1xi32>
    %103 = arith.sitofp %102 : vector<8x1xi32> to vector<8x1xf32>
    %104 = arith.mulf %99, %84 : vector<8x1xf32>
    %cst_24 = arith.constant 1.000000e+00 : f32
    %105 = vector.broadcast %cst_24 : f32 to vector<8x1xf32>
    %106 = arith.subf %105, %99 : vector<8x1xf32>
    %107 = arith.mulf %106, %91 : vector<8x1xf32>
    %108 = arith.addf %104, %107 : vector<8x1xf32>
    %cst_25 = arith.constant 0.000000e+00 : f32
    %109 = vector.broadcast %cst_25 : f32 to vector<8x1xf32>
    %110 = arith.subf %109, %108 : vector<8x1xf32>
    %c0_26 = arith.constant 0 : index
    %c0_27 = arith.constant 0 : index
    %111 = vector.load %arg8[%c0_26, %c0_27] : memref<1x1xf32, #tpu.memory_space<vmem>>, vector<1x1xf32>
    %112 = arith.mulf %110, %103 : vector<8x1xf32>
    %cst_28 = arith.constant dense<0.000000e+00> : vector<1xf32>
    %113 = vector.multi_reduction <add>, %112, %cst_28 [0] : vector<8x1xf32> to vector<1xf32>
    %114 = vector.shape_cast %113 : vector<1xf32> to vector<1x1xf32>
    %115 = arith.addf %111, %114 : vector<1x1xf32>
    %c0_29 = arith.constant 0 : index
    %c0_30 = arith.constant 0 : index
    %116 = vector.load %arg8[%c0_29, %c0_30] : memref<1x1xf32, #tpu.memory_space<vmem>>, vector<1x1xf32>
    tpu.vector_store %arg8[%c0_29, %c0_30], %115 {strides = array<i32>} : memref<1x1xf32, #tpu.memory_space<vmem>>, vector<1x1xf32>,
    %c2_i32 = arith.constant 2 : i32
    %117 = arith.cmpi eq, %arg0, %c2_i32 : i32
    %118 = arith.extui %117 : i1 to i32
    %c0_i32_31 = arith.constant 0 : i32
    %119 = arith.cmpi ne, %118, %c0_i32_31 : i32
    scf.if %119 {
      %c0_32 = arith.constant 0 : index
      %c0_33 = arith.constant 0 : index
      %120 = vector.load %arg8[%c0_32, %c0_33] : memref<1x1xf32, #tpu.memory_space<vmem>>, vector<1x1xf32>
      %cst_34 = arith.constant 5.000000e-02 : f32
      %121 = vector.broadcast %cst_34 : f32 to vector<1x1xf32>
      %122 = arith.mulf %120, %121 : vector<1x1xf32>
      %c0_35 = arith.constant 0 : index
      %c0_36 = arith.constant 0 : index
      %123 = vector.load %arg7[%c0_35, %c0_36] : memref<1x1xf32, #tpu.memory_space<vmem>>, vector<1x1xf32>
      tpu.vector_store %arg7[%c0_35, %c0_36], %122 {strides = array<i32>} : memref<1x1xf32, #tpu.memory_space<vmem>>, vector<1x1xf32>,
    } else {
    }
    return
  }
  func.func @transform_0(%arg0: i32) -> (i32, i32) {
    %c0_i32 = arith.constant 0 : i32
    %c0_i32_0 = arith.constant 0 : i32
    return %arg0, %c0_i32 : i32, i32
  }
  func.func @transform_1(%arg0: i32) -> (i32, i32) {
    %c0_i32 = arith.constant 0 : i32
    %c0_i32_0 = arith.constant 0 : i32
    return %arg0, %c0_i32 : i32, i32
  }
  func.func @transform_2(%arg0: i32) -> (i32, i32) {
    %c0_i32 = arith.constant 0 : i32
    %c0_i32_0 = arith.constant 0 : i32
    %c0_i32_1 = arith.constant 0 : i32
    return %c0_i32, %c0_i32_0 : i32, i32
  }
  func.func @transform_3(%arg0: i32) -> (i32, i32) {
    %c0_i32 = arith.constant 0 : i32
    %c0_i32_0 = arith.constant 0 : i32
    %c0_i32_1 = arith.constant 0 : i32
    return %c0_i32, %c0_i32_0 : i32, i32
  }
  func.func @transform_4(%arg0: i32) -> (i32, i32) {
    %c0_i32 = arith.constant 0 : i32
    %c0_i32_0 = arith.constant 0 : i32
    %c0_i32_1 = arith.constant 0 : i32
    return %c0_i32, %c0_i32_0 : i32, i32
  }
  func.func @transform_5(%arg0: i32) -> (i32, i32) {
    %c0_i32 = arith.constant 0 : i32
    %c0_i32_0 = arith.constant 0 : i32
    %c0_i32_1 = arith.constant 0 : i32
    return %c0_i32, %c0_i32_0 : i32, i32
  }
  func.func @transform_6(%arg0: i32) -> (i32, i32) {
    %c0_i32 = arith.constant 0 : i32
    %c0_i32_0 = arith.constant 0 : i32
    %c0_i32_1 = arith.constant 0 : i32
    return %c0_i32, %c0_i32_0 : i32, i32
  }
}

</mosaic_0001>

<llo_original>
// kernel: tpu_custom_call.1
$region0: #{tpu_custom_call.1}
  #allocation0 [shape = 'u32[]', space=smem, size = 0x4, offset = 0x4, fixed_abs, tag = 'smem constant byte address 0x4 - core index']
  #allocation1 [shape = 'u32[144,128]{1,0:T(1,128)}', space=vmem, size = 0x12000, scoped, tag = 'internal scratch']
  #allocation2 [shape = 'f32[1,1]{1,0:T(1,128)}', space=vmem, size = 0x200, scoped, tag = 'scratch operand']
  #allocation3 [shape = 'f32[1,1]{1,0:T(1,128)}', space=vmem, size = 0x200, scoped, tag = 'scratch operand']
  #allocation4 [shape = 'f32[1,1]{1,0:T(1,128)S(1)}', space=vmem, size = 0x200, scoped, tag = 'scoped memory for tpu_custom_call.1']
  %s0 = inlined_call_operand.vmem [shape: f32[24,8], index: 0, kind: input, shape index: {}]
  %s1 = inlined_call_operand.vmem [shape: f32[24,16], index: 1, kind: input, shape index: {}]
  %s2 = inlined_call_operand.vmem [shape: f32[16,256], index: 2, kind: input, shape index: {}]
  %s3 = inlined_call_operand.vmem [shape: f32[1,32], index: 3, kind: input, shape index: {}]
  %s4 = inlined_call_operand.vmem [shape: f32[1,32], index: 4, kind: input, shape index: {}]
  %s5 = inlined_call_operand.<no memory space> [shape: f32[1,1], index: 5, kind: input, shape index: {}]
  %s6 = inlined_call_operand.hbm [shape: f32[1,1], index: 6, kind: output, shape index: {}]
  %s7 = sld [smem:[#allocation0]]
  $region65: #{tpu_custom_call.1} parent=0
    _
  %s9 = ssub.s32 1, %s7
  %s10 = scalar_select 0, %s9, %s7
  %v11 = vstv %s5
  %12 = vst [vmem:[#allocation4] sm:$0x1] %v11
  $region1: #{tpu_custom_call.1} parent=0
    #allocation5 [shape = 'u8[512]{0}', space=vmem, size = 0x400, scoped, tag = 'output window, operand 0, single buffered']
    #allocation6 [shape = 's32[2]{0}', space=sflag, size = 0x8, scoped, tag = 'scoped memory for tpu_custom_call.1']
    %13 = vsyncpa [#allocation6], 0
    loop: start=0, step=1, limit=5
    $region2: #{tpu_custom_call.1} parent=1 // loop_pre_header
      _
    $region3: #{tpu_custom_call.1} parent=1 // loop_header
      %s15 = sphi 0, %s19
      %p16 = scmp.ge.s32.totalorder %s15, 5
      %s25 = sphi 0, %s27
      %s28 = sphi 0, %s25
      %s29 = sphi 0, %s28
      %s45 = sphi 0, %s29
      %s51 = sphi 0, %s53
      %s54 = sphi 0, %s51
      %s55 = sphi 0, %s54
      %s71 = sphi 0, %s55
      %s75 = sphi 0, %s75
      %s77 = sphi 0, %s75
      %s78 = sphi 0, %s77
      %s92 = sphi 0, %s78
      %s96 = sphi 0, %s96
      %s98 = sphi 0, %s96
      %s99 = sphi 0, %s98
      %s113 = sphi 0, %s99
      %s117 = sphi 0, %s117
      %s119 = sphi 0, %s117
      %s120 = sphi 0, %s119
      %s134 = sphi 0, %s120
      %s138 = sphi 0, %s138
      %s140 = sphi 0, %s138
      %s141 = sphi 0, %s140
      %s155 = sphi 0, %s141
      %s159 = sphi 0, %s159
      %s161 = sphi 0, %s159
      %s162 = sphi 0, %s161
      %s176 = sphi 0, %s162
    $region4: #{tpu_custom_call.1} parent=1 // loop_header_branch
      %18 = sbr.rel (%p16) target = $region8
    $region5: #{tpu_custom_call.1} parent=1 // loop_body
      %s20 = ssub.s32 %s15, 1
      %s21 = ssub.s32 %s15, 2
      %s22 = sadd.s32 %s15, 1
      %s23 = ssub.s32 %s15, %s22
      %p24 = scmp.eq.s32.totalorder %s23, 0
      %s26 = sadd.s32 %s25, 1
      %s27 = scalar_select %p24, %s25, %s26
      %p30 = pneg %p24
      %p31 = scmp.eq.s32.totalorder %s15, 2
      %p32 = por %p30, %p31
      %p33 = scmp.ne.s32.totalorder %s25, %s28
      %p34 = scmp.eq.s32.totalorder %s15, 0
      %p35 = por %p33, %p34
      %p36 = scmp.ne.s32.totalorder %s25, %s28
      %p37 = scmp.eq.s32.totalorder %s20, 2
      %p38 = por %p36, %p37
      %p39 = scmp.ne.s32.totalorder %s28, %s29
      %p40 = scmp.eq.s32.totalorder %s20, 0
      %p41 = por %p39, %p40
      %p42 = scmp.ne.s32.totalorder %s28, %s29
      %p43 = scmp.eq.s32.totalorder %s21, 2
      %p44 = por %p42, %p43
      %p46 = scmp.ne.s32.totalorder %s29, %s45
      %p47 = scmp.eq.s32.totalorder %s21, 0
      %p48 = por %p46, %p47
      %s49 = ssub.s32 %s15, %s22
      %p50 = scmp.eq.s32.totalorder %s49, 0
      %s52 = sadd.s32 %s51, 1
      %s53 = scalar_select %p50, %s51, %s52
      %p56 = pneg %p50
      %p57 = scmp.eq.s32.totalorder %s15, 2
      %p58 = por %p56, %p57
      %p59 = scmp.ne.s32.totalorder %s51, %s54
      %p60 = scmp.eq.s32.totalorder %s15, 0
      %p61 = por %p59, %p60
      %p62 = scmp.ne.s32.totalorder %s51, %s54
      %p63 = scmp.eq.s32.totalorder %s20, 2
      %p64 = por %p62, %p63
      %p65 = scmp.ne.s32.totalorder %s54, %s55
      %p66 = scmp.eq.s32.totalorder %s20, 0
      %p67 = por %p65, %p66
      %p68 = scmp.ne.s32.totalorder %s54, %s55
      %p69 = scmp.eq.s32.totalorder %s21, 2
      %p70 = por %p68, %p69
      %p72 = scmp.ne.s32.totalorder %s55, %s71
      %p73 = scmp.eq.s32.totalorder %s21, 0
      %p74 = por %p72, %p73
      %s76 = sadd.s32 %s75, 1
      %p79 = scmp.eq.s32.totalorder %s15, 2
      %p80 = scmp.ne.s32.totalorder %s75, %s77
      %p81 = scmp.eq.s32.totalorder %s15, 0
      %p82 = por %p80, %p81
      %p83 = scmp.ne.s32.totalorder %s75, %s77
      %p84 = scmp.eq.s32.totalorder %s20, 2
      %p85 = por %p83, %p84
      %p86 = scmp.ne.s32.totalorder %s77, %s78
      %p87 = scmp.eq.s32.totalorder %s20, 0
      %p88 = por %p86, %p87
      %p89 = scmp.ne.s32.totalorder %s77, %s78
      %p90 = scmp.eq.s32.totalorder %s21, 2
      %p91 = por %p89, %p90
      %p93 = scmp.ne.s32.totalorder %s78, %s92
      %p94 = scmp.eq.s32.totalorder %s21, 0
      %p95 = por %p93, %p94
      %s97 = sadd.s32 %s96, 1
      %p100 = scmp.eq.s32.totalorder %s15, 2
      %p101 = scmp.ne.s32.totalorder %s96, %s98
      %p102 = scmp.eq.s32.totalorder %s15, 0
      %p103 = por %p101, %p102
      %p104 = scmp.ne.s32.totalorder %s96, %s98
      %p105 = scmp.eq.s32.totalorder %s20, 2
      %p106 = por %p104, %p105
      %p107 = scmp.ne.s32.totalorder %s98, %s99
      %p108 = scmp.eq.s32.totalorder %s20, 0
      %p109 = por %p107, %p108
      %p110 = scmp.ne.s32.totalorder %s98, %s99
      %p111 = scmp.eq.s32.totalorder %s21, 2
      %p112 = por %p110, %p111
      %p114 = scmp.ne.s32.totalorder %s99, %s113
      %p115 = scmp.eq.s32.totalorder %s21, 0
      %p116 = por %p114, %p115
      %s118 = sadd.s32 %s117, 1
      %p121 = scmp.eq.s32.totalorder %s15, 2
      %p122 = scmp.ne.s32.totalorder %s117, %s119
      %p123 = scmp.eq.s32.totalorder %s15, 0
      %p124 = por %p122, %p123
      %p125 = scmp.ne.s32.totalorder %s117, %s119
      %p126 = scmp.eq.s32.totalorder %s20, 2
      %p127 = por %p125, %p126
      %p128 = scmp.ne.s32.totalorder %s119, %s120
      %p129 = scmp.eq.s32.totalorder %s20, 0
      %p130 = por %p128, %p129
      %p131 = scmp.ne.s32.totalorder %s119, %s120
      %p132 = scmp.eq.s32.totalorder %s21, 2
      %p133 = por %p131, %p132
      %p135 = scmp.ne.s32.totalorder %s120, %s134
      %p136 = scmp.eq.s32.totalorder %s21, 0
      %p137 = por %p135, %p136
      %s139 = sadd.s32 %s138, 1
      %p142 = scmp.eq.s32.totalorder %s15, 2
      %p143 = scmp.ne.s32.totalorder %s138, %s140
      %p144 = scmp.eq.s32.totalorder %s15, 0
      %p145 = por %p143, %p144
      %p146 = scmp.ne.s32.totalorder %s138, %s140
      %p147 = scmp.eq.s32.totalorder %s20, 2
      %p148 = por %p146, %p147
      %p149 = scmp.ne.s32.totalorder %s140, %s141
      %p150 = scmp.eq.s32.totalorder %s20, 0
      %p151 = por %p149, %p150
      %p152 = scmp.ne.s32.totalorder %s140, %s141
      %p153 = scmp.eq.s32.totalorder %s21, 2
      %p154 = por %p152, %p153
      %p156 = scmp.ne.s32.totalorder %s141, %s155
      %p157 = scmp.eq.s32.totalorder %s21, 0
      %p158 = por %p156, %p157
      %s160 = sadd.s32 %s159, 1
      %p163 = scmp.eq.s32.totalorder %s15, 2
      %p164 = scmp.ne.s32.totalorder %s159, %s161
      %p165 = scmp.eq.s32.totalorder %s15, 0
      %p166 = por %p164, %p165
      %p167 = scmp.ne.s32.totalorder %s159, %s161
      %p168 = scmp.eq.s32.totalorder %s20, 2
      %p169 = por %p167, %p168
      %p170 = scmp.ne.s32.totalorder %s161, %s162
      %p171 = scmp.eq.s32.totalorder %s20, 0
      %p172 = por %p170, %p171
      %p173 = scmp.ne.s32.totalorder %s161, %s162
      %p174 = scmp.eq.s32.totalorder %s21, 2
      %p175 = por %p173, %p174
      %p177 = scmp.ne.s32.totalorder %s162, %s176
      %p178 = scmp.eq.s32.totalorder %s21, 0
      %p179 = por %p177, %p178
      %p180 = scmp.le.s32.totalorder 1, %s15
      %p181 = scmp.lt.s32.totalorder %s15, 4
      %p182 = pnand %p180, %p181
      %p183 = pneg %p182
      // Predicated region
      $region9: #{tpu_custom_call.1} parent=5 // pred_check
        _
      $region10: #{tpu_custom_call.1} parent=5 // pred_check_branch
        %185 = sbr.rel (%p182) target = $region12
      $region11: #{tpu_custom_call.1} parent=5 // pred_region
        %s186 = ssub.s32 %s15, 1
        // Predicated region
        $region13: #{tpu_custom_call.1} parent=11 // pred_check
          %p187 = pneg %p88
        $region14: #{tpu_custom_call.1} parent=11 // pred_check_branch
          %189 = sbr.rel (%p187) target = $region16
        $region15: #{tpu_custom_call.1} parent=11 // pred_region
          _
        $region16: #{tpu_custom_call.1} parent=11 // pred_fallthru
          _
        // Predicated region
        $region17: #{tpu_custom_call.1} parent=11 // pred_check
          %p190 = pneg %p109
        $region18: #{tpu_custom_call.1} parent=11 // pred_check_branch
          %192 = sbr.rel (%p190) target = $region20
        $region19: #{tpu_custom_call.1} parent=11 // pred_region
          _
        $region20: #{tpu_custom_call.1} parent=11 // pred_fallthru
          _
        // Predicated region
        $region21: #{tpu_custom_call.1} parent=11 // pred_check
          %p193 = pneg %p130
        $region22: #{tpu_custom_call.1} parent=11 // pred_check_branch
          %195 = sbr.rel (%p193) target = $region24
        $region23: #{tpu_custom_call.1} parent=11 // pred_region
          _
        $region24: #{tpu_custom_call.1} parent=11 // pred_fallthru
          _
        // Predicated region
        $region25: #{tpu_custom_call.1} parent=11 // pred_check
          %p196 = pneg %p151
        $region26: #{tpu_custom_call.1} parent=11 // pred_check_branch
          %198 = sbr.rel (%p196) target = $region28
        $region27: #{tpu_custom_call.1} parent=11 // pred_region
          _
        $region28: #{tpu_custom_call.1} parent=11 // pred_fallthru
          _
      $region12: #{tpu_custom_call.1} parent=5 // pred_fallthru
        _
      %p199 = scmp.lt.s32.totalorder %s15, 3
      // Predicated region
      $region29: #{tpu_custom_call.1} parent=5 // pred_check
        %p200 = pneg %p199
      $region30: #{tpu_custom_call.1} parent=5 // pred_check_branch
        %202 = sbr.rel (%p200) target = $region32
      $region31: #{tpu_custom_call.1} parent=5 // pred_region
        // Predicated region
        $region33: #{tpu_custom_call.1} parent=31 // pred_check
          %p203 = pneg %p35
        $region34: #{tpu_custom_call.1} parent=31 // pred_check_branch
          %205 = sbr.rel (%p203) target = $region36
        $region35: #{tpu_custom_call.1} parent=31 // pred_region
          %p206 = scmp.lt.s32.totalorder %s15, 2
          %s207 = scalar_select %p206, %s15, 2
          %s208 = smul.addr %s207, 8
          %s209 = scalar_lea.vmem %s0, %s208
        $region36: #{tpu_custom_call.1} parent=31 // pred_fallthru
          _
        // Predicated region
        $region37: #{tpu_custom_call.1} parent=31 // pred_check
          %p210 = pneg %p61
        $region38: #{tpu_custom_call.1} parent=31 // pred_check_branch
          %212 = sbr.rel (%p210) target = $region40
        $region39: #{tpu_custom_call.1} parent=31 // pred_region
          %p213 = scmp.lt.s32.totalorder %s15, 2
          %s214 = scalar_select %p213, %s15, 2
          %s215 = smul.addr %s214, 8
          %s216 = scalar_lea.vmem %s1, %s215
        $region40: #{tpu_custom_call.1} parent=31 // pred_fallthru
          _
      $region32: #{tpu_custom_call.1} parent=5 // pred_fallthru
        _
      %p217 = scmp.le.s32.totalorder 1, %s15
      %p218 = scmp.lt.s32.totalorder %s15, 4
      %p219 = pnand %p217, %p218
      %p220 = pneg %p219
      // Predicated region
      $region41: #{tpu_custom_call.1} parent=5 // pred_check
        _
      $region42: #{tpu_custom_call.1} parent=5 // pred_check_branch
        %222 = sbr.rel (%p219) target = $region44
      $region43: #{tpu_custom_call.1} parent=5 // pred_region
        %s223 = ssub.s32 %s15, 1
        %p224 = scmp.lt.s32.totalorder %s20, 2
        %s225 = scalar_select %p224, %s20, 2
        %s226 = smul.addr %s225, 8
        %s227 = scalar_lea.vmem %s0, %s226
        %p228 = pneg %p41
        %p229 = pneg %p38
        %p230 = scmp.lt.s32.totalorder %s20, 2
        %s231 = scalar_select %p230, %s20, 2
        %s232 = smul.addr %s231, 8
        %s233 = scalar_lea.vmem %s1, %s232
        %p234 = pneg %p67
        %p235 = pneg %p64
        %p236 = pneg %p88
        %p237 = pneg %p85
        %p238 = pneg %p109
        %p239 = pneg %p106
        %p240 = pneg %p130
        %p241 = pneg %p127
        %p242 = pneg %p151
        %p243 = pneg %p148
        %p244 = pneg %p172
        %p245 = pneg %p169
        %p246 = scmp.lt.s32.totalorder %s20, 2
        %s247 = scalar_select %p246, %s20, 2
        %s248 = smul.addr %s247, 8
        %s249 = scalar_lea.vmem %s0, %s248
        %p250 = scmp.lt.s32.totalorder %s20, 2
        %s251 = scalar_select %p250, %s20, 2
        %s252 = smul.addr %s251, 8
        %s253 = scalar_lea.vmem %s1, %s252
        %p254 = scmp.eq.s32.totalorder %s20, 0
        // Predicated region
        $region45: #{tpu_custom_call.1} parent=43 // pred_check
          %p255 = pneg %p254
        $region46: #{tpu_custom_call.1} parent=43 // pred_check_branch
          %257 = sbr.rel (%p255) target = $region48
        $region47: #{tpu_custom_call.1} parent=43 // pred_region
          %vm258 = vcmask 0
          %259 = vst.msk [vmem:[#allocation2] sm:$0x1] %vm258, 0.0
          %260 = vst.msk [vmem:[#allocation3] sm:$0x1] %vm258, 0.0
        $region48: #{tpu_custom_call.1} parent=43 // pred_fallthru
          _
        %v261 = vld [vmem:[%s249] sm:$0xff]
        %v262 = vld [vmem:[%s253] sm:$0xff]
        %vm263 = vcmask 64512
        %v264 = vsel %vm263, %v261, -inf
        %265 = vmax.xlane.f32.xlu0 %v264
        %v266 = vpop.xlane.xlu0 %265
        %v267 = vsub.f32 %v261, %v266
        %v268 = vmul.f32 %v267, 1.442695
        %v269 = vpow.pop %v268
        %v270 = vsel %vm263, %v269, 0.0
        %271 = vadd.xlane.f32.xlu0 %v270
        %v272 = vpop.xlane.xlu0 %271
        %v273 = vrcp.pop %v272
        %v274 = vmul.f32 %v272, %v273
        %v275 = vsub.f32 2.0, %v274
        %v276 = vmul.f32 %v273, %v275
        %v277 = vmul.f32 %v269, %v276
        %v278 = vld [vmem:[%s2] sm:$0xff]
        %v279 = vld [vmem:[%s2 + $0x8] sm:$0xff]
        %v280 = vld [vmem:[%s2 + $0x10] sm:$0xff]
        %v281 = vld [vmem:[%s2 + $0x18] sm:$0xff]
        %vm282 = vcmask 130048
        %v284 = vsel %vm282, %v262, 0
        %286 = vmatprep.subr.mxu0 0.0
        %287 = vmatpush1.msra.mxu0 0.0
        %288 = vmatprep.subr.mxu0 0.0
        %289 = vmatpush1.msra.mxu0 0.0
        %290 = vmatprep.subr.mxu0 0.0
        %291 = vmatpush1.msra.mxu0 0.0
        %292 = vmatprep.subr.mxu0 0.0
        %293 = vmatpush1.msra.mxu0 0.0
        %294 = vmatprep.subr.mxu0 0.0
        %295 = vmatpush1.msra.mxu0 0.0
        %296 = vmatprep.subr.mxu0 0.0
        %297 = vmatpush1.msra.mxu0 0.0
        %298 = vmatprep.subr.mxu0 0.0
        %299 = vmatpush1.msra.mxu0 0.0
        %300 = vmatprep.subr.mxu0 0.0
        %301 = vmatpush1.msra.mxu0 0.0
        %302 = vmatprep.subr.mxu0 0.0
        %303 = vmatpush1.msra.mxu0 0.0
        %304 = vmatprep.subr.mxu0 0.0
        %305 = vmatpush1.msra.mxu0 0.0
        %306 = vmatprep.subr.mxu0 0.0
        %307 = vmatpush1.msra.mxu0 0.0
        %308 = vmatprep.subr.mxu0 0.0
        %309 = vmatpush1.msra.mxu0 0.0
        %310 = vmatprep.subr.mxu0 0.0
        %311 = vmatpush1.msra.mxu0 0.0
        %312 = vmatprep.subr.mxu0 0.0
        %313 = vmatpush1.msra.mxu0 0.0
        %314 = vmatprep.subr.mxu0 %v281
        %315 = vmatpush1.msra.mxu0 %v280
        %316 = vmatprep.subr.mxu0 %v279
        %317 = vmatpush1.msra.mxu0 %v278
        %318 = vmatprep.subr.mxu0 0.0
        %319 = vmatpush2.msra.mxu0 0.0
        %320 = vmatprep.subr.mxu0 0.0
        %321 = vmatpush2.msra.mxu0 0.0
        %322 = vmatprep.subr.mxu0 0.0
        %323 = vmatpush2.msra.mxu0 0.0
        %324 = vmatprep.subr.mxu0 0.0
        %325 = vmatpush2.msra.mxu0 0.0
        %326 = vmatprep.subr.mxu0 0.0
        %327 = vmatpush2.msra.mxu0 0.0
        %328 = vmatprep.subr.mxu0 0.0
        %329 = vmatpush2.msra.mxu0 0.0
        %330 = vmatprep.subr.mxu0 0.0
        %331 = vmatpush2.msra.mxu0 0.0
        %332 = vmatprep.subr.mxu0 0.0
        %333 = vmatpush2.msra.mxu0 0.0
        %334 = vmatprep.subr.mxu0 0.0
        %335 = vmatpush2.msra.mxu0 0.0
        %336 = vmatprep.subr.mxu0 0.0
        %337 = vmatpush2.msra.mxu0 0.0
        %338 = vmatprep.subr.mxu0 0.0
        %339 = vmatpush2.msra.mxu0 0.0
        %340 = vmatprep.subr.mxu0 0.0
        %341 = vmatpush2.msra.mxu0 0.0
        %342 = vmatprep.subr.mxu0 0.0
        %343 = vmatpush2.msra.mxu0 0.0
        %344 = vmatprep.subr.mxu0 0.0
        %345 = vmatpush2.msra.mxu0 0.0
        %346 = vmatprep.subr.mxu0 0.0
        %347 = vmatpush2.msra.mxu0 0.0
        %348 = vmatprep.subr.mxu0 0.0
        %349 = vmatpush2.msra.mxu0 0.0
        %350 = vmatprep.mubr.f32.mxu0 0.0
        %351 = vmatmul.mubr.f32.gmra.mxu0 %v284
        %v352 = vpop.f32.mrf.mxu0
        %v353 = vadd.f32 0.0, %v352
        %v354 = vpop.f32.mrf.mxu0
        %v355 = vadd.f32 0.0, %v354
        %356 = vdwg.mxu0
        %v357 = vld [vmem:[%s3] sm:$0x1]
        %359 = vset.pattern.permute.xlu0 0
        %360 = vperm.xlu0 %359, %v277
        %v361 = vpop.permute.xlu0 %360
        %v363 = vmul.f32 %v361, %v353
        %v365 = vlaneseq
        %v366 = vshrl.u32 %v365, 7
        %v367 = vsub.s32 0, %v366
        %v368 = vrot.slane %v357, %v367
        %v370 = vadd.f32 %v368, %v363
        %371 = vset.pattern.permute.xlu0 1
        %372 = vperm.xlu0 %371, %v277
        %v373 = vpop.permute.xlu0 %372
        %v375 = vmul.f32 %v373, %v353
        %377 = vrot.lane.b32.xlu0 %v375, 96
        %v378 = vpop.permute.xlu0 %377
        %v380 = vadd.f32 %v370, %v378
        %381 = vset.pattern.permute.xlu0 2
        %382 = vperm.xlu0 %381, %v277
        %v383 = vpop.permute.xlu0 %382
        %v385 = vmul.f32 %v383, %v353
        %387 = vrot.lane.b32.xlu0 %v385, 64
        %v388 = vpop.permute.xlu0 %387
        %v390 = vadd.f32 %v380, %v388
        %391 = vset.pattern.permute.xlu0 3
        %392 = vperm.xlu0 %391, %v277
        %v393 = vpop.permute.xlu0 %392
        %v395 = vmul.f32 %v393, %v353
        %397 = vrot.lane.b32.xlu0 %v395, 32
        %v398 = vpop.permute.xlu0 %397
        %v400 = vadd.f32 %v390, %v398
        %401 = vset.pattern.permute.xlu0 4
        %402 = vperm.xlu0 %401, %v277
        %v403 = vpop.permute.xlu0 %402
        %v405 = vmul.f32 %v403, %v355
        %v406 = vadd.f32 %v400, %v405
        %407 = vset.pattern.permute.xlu0 5
        %408 = vperm.xlu0 %407, %v277
        %v409 = vpop.permute.xlu0 %408
        %v411 = vmul.f32 %v409, %v355
        %413 = vrot.lane.b32.xlu0 %v411, 96
        %v414 = vpop.permute.xlu0 %413
        %v416 = vadd.f32 %v406, %v414
        %417 = vset.pattern.permute.xlu0 6
        %418 = vperm.xlu0 %417, %v277
        %v419 = vpop.permute.xlu0 %418
        %v421 = vmul.f32 %v419, %v355
        %423 = vrot.lane.b32.xlu0 %v421, 64
        %v424 = vpop.permute.xlu0 %423
        %v426 = vadd.f32 %v416, %v424
        %427 = vset.pattern.permute.xlu0 7
        %428 = vperm.xlu0 %427, %v277
        %v429 = vpop.permute.xlu0 %428
        %v431 = vmul.f32 %v429, %v355
        %433 = vrot.lane.b32.xlu0 %v431, 32
        %v434 = vpop.permute.xlu0 %433
        %v436 = vadd.f32 %v426, %v434
        %v437 = vmax.f32 %v436, 0.0
        %v438 = vld [vmem:[%s4] sm:$0x1]
        %v440 = vlaneseq
        %v441 = vshrl.u32 %v440, 7
        %v442 = vsub.s32 0, %v441
        %v443 = vrot.slane %v438, %v442
        %v445 = vmul.f32 %v437, %v443
        %vm446 = vcmask 261120
        %v447 = vsel %vm446, %v445, 0.0
        %448 = vadd.xlane.f32.xlu0 %v447
        %v449 = vpop.xlane.xlu0 %448
        %v450 = vld [vmem:[#allocation4] sm:$0x1]
        %v452 = vlaneseq
        %v453 = vshrl.u32 %v452, 7
        %v454 = vsub.s32 0, %v453
        %v455 = vrot.slane %v450, %v454
        %v457 = vadd.f32 %v449, %v455
        %v458 = vand.u32 2147483647, %v457
        %v459 = vsub.f32 0.0, %v458
        %v460 = vmul.f32 %v459, 1.442695
        %v461 = vpow.pop %v460
        %v462 = vadd.f32 %v461, 1.0
        %v463 = vlog2.pop %v462
        %v464 = vmul.f32 %v463, 0.6931472
        %v465 = vmin.f32 %v457, 0.0
        %v466 = vsub.f32 %v465, %v464
        %v467 = vmax.f32 %v466, -100.0
        %v468 = vsub.f32 0.0, %v457
        %v469 = vmin.f32 %v468, 0.0
        %v470 = vsub.f32 %v469, %v464
        %v471 = vmax.f32 %v470, -100.0
        %s472 = smul.u32 %s20, 8
        %v473 = vlaneseq
        %v474 = vshrl.u32 %v473, 7
        %v475 = vstv %s472
        %v476 = vadd.s32 %v475, %v474
        %vm477 = vcmp.lt.s32.totalorder %v476, 10
        %v478 = vsel %vm477, 1, 0
        %v479 = vcvt.s32.f32 %v478
        %vm480 = vcmp.lt.s32.totalorder %v476, 20
        %v481 = vsel %vm480, 1, 0
        %v482 = vcvt.s32.f32 %v481
        %v483 = vmul.f32 %v479, %v467
        %v484 = vsub.f32 1.0, %v479
        %v485 = vmul.f32 %v484, %v471
        %v486 = vadd.f32 %v483, %v485
        %v487 = vsub.f32 0.0, %v486
        %v488 = vld [vmem:[#allocation2] sm:$0x1]
        %v489 = vmul.f32 %v487, %v482
        %vm490 = vcmask 7168
        %v491 = vsel %vm490, %v489, 0.0
        %v492 = vrot.slane %v491, 4
        %v493 = vadd.f32 %v491, %v492
        %v494 = vrot.slane %v493, 2
        %v495 = vadd.f32 %v493, %v494
        %v496 = vrot.slane %v495, 1
        %v497 = vadd.f32 %v495, %v496
        %v498 = vadd.f32 %v488, %v497
        %vm499 = vcmask 0
        %500 = vst.msk [vmem:[#allocation2] sm:$0x1] %vm499, %v498
        %p501 = scmp.eq.s32.totalorder %s20, 2
        // Predicated region
        $region49: #{tpu_custom_call.1} parent=43 // pred_check
          %p502 = pneg %p501
        $region50: #{tpu_custom_call.1} parent=43 // pred_check_branch
          %504 = sbr.rel (%p502) target = $region52
        $region51: #{tpu_custom_call.1} parent=43 // pred_region
          %v505 = vld [vmem:[#allocation2] sm:$0x1]
          %v506 = vmul.f32 %v505, 0.05
          %507 = vst.msk [vmem:[#allocation5] sm:$0x1] %vm499, %v506
        $region52: #{tpu_custom_call.1} parent=43 // pred_fallthru
          _
        // Predicated region
        $region53: #{tpu_custom_call.1} parent=43 // pred_check
          %p508 = pneg %p169
        $region54: #{tpu_custom_call.1} parent=43 // pred_check_branch
          %510 = sbr.rel (%p508) target = $region56
        $region55: #{tpu_custom_call.1} parent=43 // pred_region
          %s512 = ssub.s32 16, 16
          %513 = vsyncadd [#allocation6], %s512
          %s515 = sshll.u32 [#allocation5], 4
          %s516 = int_to_ptr.vmem [resolvable:$true] %s515
          %518 = dma.vmem_to_hbm [thread:$0]  %s516, 16, %s6, [#allocation6]
        $region56: #{tpu_custom_call.1} parent=43 // pred_fallthru
          _
        // Predicated region
        $region57: #{tpu_custom_call.1} parent=43 // pred_check
          %p519 = pneg %p169
        $region58: #{tpu_custom_call.1} parent=43 // pred_check_branch
          %521 = sbr.rel (%p519) target = $region60
        $region59: #{tpu_custom_call.1} parent=43 // pred_region
          %522 = dma.done [#allocation6], 16
        $region60: #{tpu_custom_call.1} parent=43 // pred_fallthru
          _
      $region44: #{tpu_custom_call.1} parent=5 // pred_fallthru
        _
      %p523 = scmp.le.s32.totalorder 2, %s15
      // Predicated region
      $region61: #{tpu_custom_call.1} parent=5 // pred_check
        %p524 = pneg %p523
      $region62: #{tpu_custom_call.1} parent=5 // pred_check_branch
        %526 = sbr.rel (%p524) target = $region64
      $region63: #{tpu_custom_call.1} parent=5 // pred_region
        %s527 = ssub.s32 %s15, 2
      $region64: #{tpu_custom_call.1} parent=5 // pred_fallthru
        _
    $region6: #{tpu_custom_call.1} parent=1 // loop_footer
      %s19 = sadd.s32 1, %s15
    $region7: #{tpu_custom_call.1} parent=1 // loop_footer_branch
      %14 = sbr.rel target = $region3
    $region8: #{tpu_custom_call.1} parent=1 // loop_exit
      _
    %528 = vsyncpa [#allocation6], 1
    %s529 = scalar_lea.sflag [#allocation6], 1
    %530 = vsyncpa %s529, 1

</llo_original>
